<compile_context>
chip_gen: v7x
topology: tpu7x:2x2x1
jax: 0.10.0
libtpu: 0.0.40
codegen_flags: <defaults>
</compile_context>

<pallas_src>
import jax
import jax.numpy as jnp
from jax.experimental import pallas as pl
from jax.experimental.pallas import tpu as pltpu

_LANES = 128
_MAX_TILE_ROWS = 512  # 512 x 128 x 4B = 256 KiB per buffer; safe on v5e/v6e/v7x.


def _copy_kernel(x_ref, o_ref):
    # Straight full-tile copy; the batch-dim add happens (for free) outside.
    o_ref[...] = x_ref[...]


def _tiled_identity_copy(x2):
    """Lane-dense (rows, 128) identity copy with a 1-D pipelined grid."""
    rows, lanes = x2.shape
    if rows <= _MAX_TILE_ROWS:
        tile_r = rows  # block == full array dim -> no (8,128) constraint issue
    else:
        tile_r = _MAX_TILE_ROWS  # multiple of 8; ragged last block is masked
    grid = (pl.cdiv(rows, tile_r),)
    return pl.pallas_call(
        _copy_kernel,
        out_shape=jax.ShapeDtypeStruct((rows, lanes), x2.dtype),
        grid=grid,
        in_specs=[pl.BlockSpec((tile_r, lanes), lambda i: (i, 0))],
        out_specs=pl.BlockSpec((tile_r, lanes), lambda i: (i, 0)),
        compiler_params=pltpu.CompilerParams(
            dimension_semantics=("parallel",)),
        cost_estimate=pl.CostEstimate(
            flops=0, transcendentals=0, bytes_accessed=2 * x2.size * x2.dtype.itemsize),
    )(x2)


def _full_block_copy(x):
    """Fallback for sizes not divisible by 128: single full-array block."""
    return pl.pallas_call(
        _copy_kernel,
        out_shape=jax.ShapeDtypeStruct(x.shape, x.dtype),
        in_specs=[pl.BlockSpec(x.shape, lambda: (0,) * x.ndim)],
        out_specs=pl.BlockSpec(x.shape, lambda: (0,) * x.ndim),
        cost_estimate=pl.CostEstimate(
            flops=0, transcendentals=0, bytes_accessed=2 * x.size * x.dtype.itemsize),
    )(x)


def add_batch_dim(x):
    """Pallas equivalent of AddBatchDimLayer.forward: x -> x[None, ...]."""
    total = x.size
    if total % _LANES == 0:
        y2 = _tiled_identity_copy(x.reshape(total // _LANES, _LANES))
        return y2.reshape((1,) + x.shape)  # rank change = free metadata op
    # TODO(synk): sizes not divisible by 128 fall back to a single-block copy
    # (correct but not lane-dense); could pad to 128 lanes if it ever matters.
    return _full_block_copy(x).reshape((1,) + x.shape)


if __name__ == "__main__":
    key = jax.random.PRNGKey(0)
    # Small CHW input consistent with the transform (no batch dim yet).
    C, H, W = 4, 16, 16
    x = jax.random.normal(key, (C, H, W), dtype=jnp.float32)

    y = add_batch_dim(x)
    y = jax.block_until_ready(y)

    ref = x[None, ...]
    assert y.shape == (1, C, H, W), y.shape
    assert y.dtype == x.dtype
    assert bool(jnp.array_equal(y, ref))

    print("KERNEL_OK")
</pallas_src>

<mosaic_0001>
module attributes {stable_mosaic.version = 11 : i64} {
  func.func @_copy_kernel(%arg0: i32, %arg1: memref<8x128xf32, #tpu.memory_space<vmem>>, %arg2: memref<8x128xf32, #tpu.memory_space<vmem>>) attributes {dimension_semantics = [#tpu.dimension_semantics<parallel>], iteration_bounds = array<i64: 1>, scalar_prefetch = 0 : i64, scratch_operands = 0 : i64, tpu.core_type = #tpu.core_type<tc>, window_params = [{transform_indices = @transform_0, window_bounds = array<i64: 8, 128>}, {transform_indices = @transform_1, window_bounds = array<i64: 8, 128>}]} {
    %c0 = arith.constant 0 : index
    %c0_0 = arith.constant 0 : index
    %0 = vector.load %arg1[%c0, %c0_0] : memref<8x128xf32, #tpu.memory_space<vmem>>, vector<8x128xf32>
    %c0_1 = arith.constant 0 : index
    %c0_2 = arith.constant 0 : index
    %1 = vector.load %arg2[%c0_1, %c0_2] : memref<8x128xf32, #tpu.memory_space<vmem>>, vector<8x128xf32>
    tpu.vector_store %arg2[%c0_1, %c0_2], %0 {strides = array<i32>} : memref<8x128xf32, #tpu.memory_space<vmem>>, vector<8x128xf32>,
    return
  }
  func.func @transform_0(%arg0: i32) -> (i32, i32) {
    %c0_i32 = arith.constant 0 : i32
    %c0_i32_0 = arith.constant 0 : i32
    return %arg0, %c0_i32 : i32, i32
  }
  func.func @transform_1(%arg0: i32) -> (i32, i32) {
    %c0_i32 = arith.constant 0 : i32
    %c0_i32_0 = arith.constant 0 : i32
    return %arg0, %c0_i32 : i32, i32
  }
}

</mosaic_0001>

<llo_original>
// kernel: tpu_custom_call.1
$region0: #{tpu_custom_call.1}
  #allocation0 [shape = 'u32[]', space=smem, size = 0x4, offset = 0x4, fixed_abs, tag = 'smem constant byte address 0x4 - core index']
  #allocation1 [shape = 'u32[144,128]{1,0:T(1,128)}', space=vmem, size = 0x12000, scoped, tag = 'internal scratch']
  %s0 = inlined_call_operand.hbm [shape: f32[8,128], index: 0, kind: input, shape index: {}]
  %s1 = inlined_call_operand.hbm [shape: f32[8,128], index: 1, kind: output, shape index: {}]
  %s2 = sld [smem:[#allocation0]]
  $region18: #{tpu_custom_call.1} parent=0
    _
  %s4 = ssub.s32 1, %s2
  %s5 = scalar_select 0, %s4, %s2
  $region1: #{tpu_custom_call.1} parent=0
    #allocation2 [shape = 'u8[4096]{0}', space=vmem, size = 0x1000, scoped, tag = 'input window, operand 0, single buffered']
    #allocation3 [shape = 's32[1]{0}', space=sflag, size = 0x4, scoped, tag = 'scoped memory for tpu_custom_call.1']
    #allocation4 [shape = 's32[1]{0}', space=sflag, size = 0x4, scoped, tag = 'scoped memory for tpu_custom_call.1']
    #allocation5 [shape = 'u8[4096]{0}', space=vmem, size = 0x1000, scoped, tag = 'output window, operand 0, single buffered']
    %6 = vsyncpa [#allocation3], 0
    %7 = vsyncpa [#allocation4], 0
    // Predicated region
    $region2: #{tpu_custom_call.1} parent=1 // pred_check
      _
    $region3: #{tpu_custom_call.1} parent=1 // pred_check_branch
      %9 = sbr.rel (0) target = $region5
    $region4: #{tpu_custom_call.1} parent=1 // pred_region
      %s11 = ssub.s32 128, 128
      %12 = vsyncadd [#allocation3], %s11
      %s14 = sshll.u32 [#allocation2], 4
      %s15 = int_to_ptr.vmem [resolvable:$true] %s14
      %17 = dma.hbm_to_vmem [thread:$0]  %s0, 128, %s15, [#allocation3]
    $region5: #{tpu_custom_call.1} parent=1 // pred_fallthru
      _
    // Predicated region
    $region6: #{tpu_custom_call.1} parent=1 // pred_check
      _
    $region7: #{tpu_custom_call.1} parent=1 // pred_check_branch
      %19 = sbr.rel (0) target = $region9
    $region8: #{tpu_custom_call.1} parent=1 // pred_region
      %20 = dma.done [#allocation3], 128
    $region9: #{tpu_custom_call.1} parent=1 // pred_fallthru
      _
    %v21 = vld [vmem:[#allocation2] sm:$0xff]
    %22 = vst [vmem:[#allocation5] sm:$0xff] %v21
    // Predicated region
    $region10: #{tpu_custom_call.1} parent=1 // pred_check
      _
    $region11: #{tpu_custom_call.1} parent=1 // pred_check_branch
      %24 = sbr.rel (0) target = $region13
    $region12: #{tpu_custom_call.1} parent=1 // pred_region
      %s26 = ssub.s32 128, 128
      %27 = vsyncadd [#allocation4], %s26
      %s29 = sshll.u32 [#allocation5], 4
      %s30 = int_to_ptr.vmem [resolvable:$true] %s29
      %32 = dma.vmem_to_hbm [thread:$0]  %s30, 128, %s1, [#allocation4]
    $region13: #{tpu_custom_call.1} parent=1 // pred_fallthru
      _
    // Predicated region
    $region14: #{tpu_custom_call.1} parent=1 // pred_check
      _
    $region15: #{tpu_custom_call.1} parent=1 // pred_check_branch
      %34 = sbr.rel (0) target = $region17
    $region16: #{tpu_custom_call.1} parent=1 // pred_region
      %35 = dma.done [#allocation4], 128
    $region17: #{tpu_custom_call.1} parent=1 // pred_fallthru
      _
    %36 = vsyncpa [#allocation3], 1
    %37 = vsyncpa [#allocation4], 1

</llo_original>
